<compile_context>
chip_gen: v5e
topology: v5e:2x2
jax: 0.10.0
libtpu: 0.0.40
codegen_flags: <defaults>
</compile_context>

<pallas_src>
import jax
import jax.numpy as jnp
from jax import lax
from jax.experimental import pallas as pl
from jax.experimental.pallas import tpu as pltpu

EPS = 1e-5
C = 16
TW_MAX = 16384            # max lanes per grid step (multiple of 128)
VMEM_LIMIT = 32 << 20     # explicit scoped-VMEM limit (safe on v5e/v6e/v7x)


def _tile_plan(hw: int):
    """Lane tile (multiple of 128, <= TW_MAX), padded H*W, and #tiles per row."""
    hw128 = -(-hw // 128) * 128
    num_tiles = max(1, -(-hw128 // TW_MAX))
    tw = -(-hw128 // (num_tiles * 128)) * 128
    return tw, tw * num_tiles, num_tiles


def _stats_kernel(x_ref, g_ref, s_ref):
    """Pass 1: per-batch Gram matrix and channel sums of h = relu(x)."""
    @pl.when(pl.program_id(1) == 0)
    def _():
        g_ref[...] = jnp.zeros_like(g_ref)
        s_ref[...] = jnp.zeros_like(s_ref)

    h = jnp.maximum(x_ref[...], 0.0)                     # (C, TW) f32
    hb = h.astype(jnp.bfloat16)
    # G += h @ h^T, contracting the lane axis of both operands (no transpose).
    g_ref[...] += lax.dot_general(
        hb, hb, (((1,), (1,)), ((), ())), preferred_element_type=jnp.float32)
    s_ref[...] += jnp.sum(h, axis=1, keepdims=True)


def _apply_kernel(x_ref, w3e_ref, shift_ref, w4_ref, b4_ref, o_ref):
    """Pass 2: folded (BN o conv1)(relu(x)) -> ReLU -> conv2, lane-dense store."""
    h = jnp.maximum(x_ref[...], 0.0).astype(jnp.bfloat16)          # (C, TW)
    yn = (jnp.dot(w3e_ref[...], h, preferred_element_type=jnp.float32)
          + shift_ref[...])
    h2 = jnp.maximum(yn, 0.0).astype(jnp.bfloat16)
    o_ref[...] = (jnp.dot(w4_ref[...], h2, preferred_element_type=jnp.float32)
                  + b4_ref[...])


def module3_forward(x_nchw, w3, b3, gamma, beta, w4, b4):
    """x_nchw: (N,16,H,W) f32. w3/w4: (out,in)=(16,16). b3/b4/gamma/beta: (16,1)."""
    n, c, hgt, wid = x_nchw.shape
    assert c == C
    hw = hgt * wid
    m = n * hw                                   # true pixel count for BN stats
    tw, hw_pad, num_tiles = _tile_plan(hw)

    x3 = x_nchw.reshape(n, c, hw)                # free: H*W contiguous per channel
    if hw_pad != hw:
        # Zero padding is exact: relu(0)=0 contributes nothing to G / s.
        x3 = jnp.pad(x3, ((0, 0), (0, 0), (0, hw_pad - hw)))

    grid = (n, num_tiles)
    x_spec = pl.BlockSpec((None, c, tw), lambda i, j: (i, 0, j))
    wmat_spec = pl.BlockSpec((c, c), lambda i, j: (0, 0))
    cvec_spec = pl.BlockSpec((c, 1), lambda i, j: (0, 0))
    gpart_spec = pl.BlockSpec((None, c, c), lambda i, j: (i, 0, 0))
    spart_spec = pl.BlockSpec((None, c, 1), lambda i, j: (i, 0, 0))

    # ---- Pass 1: global statistics of h = relu(x) (per-batch partials) ----
    gram_p, sum_p = pl.pallas_call(
        _stats_kernel,
        grid=grid,
        out_shape=(jax.ShapeDtypeStruct((n, c, c), jnp.float32),
                   jax.ShapeDtypeStruct((n, c, 1), jnp.float32)),
        in_specs=[x_spec],
        out_specs=(gpart_spec, spart_spec),
        compiler_params=pltpu.CompilerParams(
            dimension_semantics=("parallel", "arbitrary"),
            vmem_limit_bytes=VMEM_LIMIT),
        cost_estimate=pl.CostEstimate(
            flops=2 * c * c * n * hw_pad + 3 * c * n * hw_pad,
            transcendentals=0,
            bytes_accessed=4 * (n * hw_pad * c + n * (c * c + c))),
    )(x3)

    # ---- Host-side fold (tiny 16x16 math, f32) ----
    g = jnp.sum(gram_p, axis=0)                  # (C, C)
    s = jnp.sum(sum_p, axis=0)                   # (C, 1)
    mu_h = s / m
    cov_h = g / m - mu_h @ mu_h.T
    mean_y = w3 @ mu_h + b3                      # mean of y = conv1(relu(x))
    var_y = jnp.sum((w3 @ cov_h) * w3, axis=1, keepdims=True)
    var_y = jnp.maximum(var_y, 0.0)              # guard E[y^2]-E[y]^2 cancellation
    inv_std = lax.rsqrt(var_y + EPS)
    scale = gamma * inv_std
    # yn = scale*(W3 h + b3) + (beta - mean_y*scale) = W3_eff h + shift_eff
    w3_eff = (scale * w3).astype(jnp.bfloat16)   # row-scaled, bf16 single-pass MXU
    shift_eff = scale * b3 + beta - mean_y * scale
    w4_bf = w4.astype(jnp.bfloat16)

    # ---- Pass 2: folded conv1+BN -> ReLU -> conv2 ----
    out = pl.pallas_call(
        _apply_kernel,
        grid=grid,
        out_shape=jax.ShapeDtypeStruct((n, c, hw_pad), jnp.float32),
        in_specs=[x_spec, wmat_spec, cvec_spec, wmat_spec, cvec_spec],
        out_specs=x_spec,
        compiler_params=pltpu.CompilerParams(
            dimension_semantics=("parallel", "parallel"),
            vmem_limit_bytes=VMEM_LIMIT),
        cost_estimate=pl.CostEstimate(
            flops=4 * c * c * n * hw_pad + 4 * c * n * hw_pad,
            transcendentals=0,
            bytes_accessed=4 * (2 * n * hw_pad * c + 2 * c * c + 2 * c)),
    )(x3, w3_eff, shift_eff, w4_bf, b4)

    if hw_pad != hw:
        out = out[:, :, :hw]
    return out.reshape(n, c, hgt, wid)


def _reference(x, w3, b3, gamma, beta, w4, b4):
    """Pure-JAX f32 reference of Module3.forward (training-mode BatchNorm)."""
    n, c, hgt, wid = x.shape
    h = jnp.maximum(x, 0.0)
    y = jnp.einsum('oi,nihw->nohw', w3, h) + b3.reshape(1, c, 1, 1)
    mean = jnp.mean(y, axis=(0, 2, 3), keepdims=True)
    var = jnp.mean((y - mean) ** 2, axis=(0, 2, 3), keepdims=True)
    yn = ((y - mean) * lax.rsqrt(var + EPS) * gamma.reshape(1, c, 1, 1)
          + beta.reshape(1, c, 1, 1))
    h2 = jnp.maximum(yn, 0.0)
    return jnp.einsum('oi,nihw->nohw', w4, h2) + b4.reshape(1, c, 1, 1)


if __name__ == "__main__":
    key = jax.random.PRNGKey(0)
    k_x, k_w3, k_b3, k_g, k_bt, k_w4, k_b4 = jax.random.split(key, 7)

    N, H, W = 2, 16, 16
    x = jax.random.normal(k_x, (N, C, H, W), dtype=jnp.float32)

    # Conv2d(16,16,1,1,0) weights: PyTorch (out,in,1,1) squeezed -> (out,in).
    bound = 1.0 / jnp.sqrt(16.0)
    w3 = jax.random.uniform(k_w3, (C, C), jnp.float32, -bound, bound)
    b3 = jax.random.uniform(k_b3, (C, 1), jnp.float32, -bound, bound)
    w4 = jax.random.uniform(k_w4, (C, C), jnp.float32, -bound, bound)
    b4 = jax.random.uniform(k_b4, (C, 1), jnp.float32, -bound, bound)

    # BatchNorm2d affine params (defaults weight=1, bias=0), perturbed so the
    # affine path is exercised.
    gamma = 1.0 + 0.1 * jax.random.normal(k_g, (C, 1), jnp.float32)
    beta = 0.1 * jax.random.normal(k_bt, (C, 1), jnp.float32)

    out = module3_forward(x, w3, b3, gamma, beta, w4, b4)
    jax.block_until_ready(out)

    assert out.shape == (N, C, H, W)
    assert out.dtype == jnp.float32

    # Sanity check vs a pure-f32 reference.  The kernel runs its matmuls in
    # bf16 (MXU single-pass), so tolerances account for bf16 rounding.
    ref = _reference(x, w3, b3, gamma, beta, w4, b4)
    err = jnp.abs(out - ref)
    max_err = float(jnp.max(err))
    mean_err = float(jnp.mean(err))
    assert max_err < 1e-1, f"max abs error {max_err}"
    assert mean_err < 2e-2, f"mean abs error {mean_err}"

    print("KERNEL_OK")
</pallas_src>

<mosaic_0001>
module attributes {stable_mosaic.version = 11 : i64} {
  func.func @_stats_kernel(%arg0: i32, %arg1: i32, %arg2: memref<1x16x256xf32, #tpu.memory_space<vmem>>, %arg3: memref<1x16x16xf32, #tpu.memory_space<vmem>>, %arg4: memref<1x16x1xf32, #tpu.memory_space<vmem>>) attributes {dimension_semantics = [#tpu.dimension_semantics<parallel>, #tpu.dimension_semantics<arbitrary>], iteration_bounds = array<i64: 2, 1>, scalar_prefetch = 0 : i64, scratch_operands = 0 : i64, tpu.core_type = #tpu.core_type<tc>, window_params = [{transform_indices = @transform_0, window_bounds = array<i64: 1, 16, 256>}, {transform_indices = @transform_1, window_bounds = array<i64: 1, 16, 16>}, {transform_indices = @transform_2, window_bounds = array<i64: 1, 16, 1>}]} {
    %c0_i32 = arith.constant 0 : i32
    %0 = arith.cmpi eq, %arg1, %c0_i32 : i32
    %1 = arith.extui %0 : i1 to i32
    %c0_i32_0 = arith.constant 0 : i32
    %2 = arith.cmpi ne, %1, %c0_i32_0 : i32
    scf.if %2 {
      %cst_17 = arith.constant 0.000000e+00 : f32
      %23 = vector.broadcast %cst_17 : f32 to vector<16x16xf32>
      %c0_18 = arith.constant 0 : index
      %c0_19 = arith.constant 0 : index
      %c0_20 = arith.constant 0 : index
      %24 = vector.load %arg3[%c0_18, %c0_19, %c0_20] : memref<1x16x16xf32, #tpu.memory_space<vmem>>, vector<1x16x16xf32>
      %25 = vector.shape_cast %24 : vector<1x16x16xf32> to vector<16x16xf32>
      %26 = vector.shape_cast %23 : vector<16x16xf32> to vector<1x16x16xf32>
      tpu.vector_store %arg3[%c0_18, %c0_19, %c0_20], %26 {strides = array<i32>} : memref<1x16x16xf32, #tpu.memory_space<vmem>>, vector<1x16x16xf32>,
      %cst_21 = arith.constant 0.000000e+00 : f32
      %27 = vector.broadcast %cst_21 : f32 to vector<16x1xf32>
      %c0_22 = arith.constant 0 : index
      %c0_23 = arith.constant 0 : index
      %c0_24 = arith.constant 0 : index
      %28 = vector.load %arg4[%c0_22, %c0_23, %c0_24] : memref<1x16x1xf32, #tpu.memory_space<vmem>>, vector<1x16x1xf32>
      %29 = vector.shape_cast %28 : vector<1x16x1xf32> to vector<16x1xf32>
      %30 = vector.shape_cast %27 : vector<16x1xf32> to vector<1x16x1xf32>
      tpu.vector_store %arg4[%c0_22, %c0_23, %c0_24], %30 {strides = array<i32>} : memref<1x16x1xf32, #tpu.memory_space<vmem>>, vector<1x16x1xf32>,
    } else {
    }
    %c0 = arith.constant 0 : index
    %c0_1 = arith.constant 0 : index
    %c0_2 = arith.constant 0 : index
    %3 = vector.load %arg2[%c0, %c0_1, %c0_2] : memref<1x16x256xf32, #tpu.memory_space<vmem>>, vector<1x16x256xf32>
    %4 = vector.shape_cast %3 : vector<1x16x256xf32> to vector<16x256xf32>
    %cst = arith.constant 0.000000e+00 : f32
    %5 = vector.broadcast %cst : f32 to vector<16x256xf32>
    %6 = arith.maximumf %4, %5 : vector<16x256xf32>
    %7 = arith.truncf %6 : vector<16x256xf32> to vector<16x256xbf16>
    %c0_3 = arith.constant 0 : index
    %c0_4 = arith.constant 0 : index
    %c0_5 = arith.constant 0 : index
    %8 = vector.load %arg3[%c0_3, %c0_4, %c0_5] : memref<1x16x16xf32, #tpu.memory_space<vmem>>, vector<1x16x16xf32>
    %9 = vector.shape_cast %8 : vector<1x16x16xf32> to vector<16x16xf32>
    %cst_6 = arith.constant dense<0.000000e+00> : vector<16x16xf32>
    %10 = tpu.matmul %7, %7, %cst_6 {dimension_numbers = #tpu.dot_dimension_numbers<[1], [1], [0], [0], [0, 0, 1, 0], [], []>} : vector<16x256xbf16>, vector<16x256xbf16>, vector<16x16xf32> -> vector<16x16xf32>
    %11 = arith.addf %9, %10 : vector<16x16xf32>
    %c0_7 = arith.constant 0 : index
    %c0_8 = arith.constant 0 : index
    %c0_9 = arith.constant 0 : index
    %12 = vector.load %arg3[%c0_7, %c0_8, %c0_9] : memref<1x16x16xf32, #tpu.memory_space<vmem>>, vector<1x16x16xf32>
    %13 = vector.shape_cast %12 : vector<1x16x16xf32> to vector<16x16xf32>
    %14 = vector.shape_cast %11 : vector<16x16xf32> to vector<1x16x16xf32>
    tpu.vector_store %arg3[%c0_7, %c0_8, %c0_9], %14 {strides = array<i32>} : memref<1x16x16xf32, #tpu.memory_space<vmem>>, vector<1x16x16xf32>,
    %c0_10 = arith.constant 0 : index
    %c0_11 = arith.constant 0 : index
    %c0_12 = arith.constant 0 : index
    %15 = vector.load %arg4[%c0_10, %c0_11, %c0_12] : memref<1x16x1xf32, #tpu.memory_space<vmem>>, vector<1x16x1xf32>
    %16 = vector.shape_cast %15 : vector<1x16x1xf32> to vector<16x1xf32>
    %cst_13 = arith.constant dense<0.000000e+00> : vector<16xf32>
    %17 = vector.multi_reduction <add>, %6, %cst_13 [1] : vector<16x256xf32> to vector<16xf32>
    %18 = vector.shape_cast %17 : vector<16xf32> to vector<16x1xf32>
    %19 = arith.addf %16, %18 : vector<16x1xf32>
    %c0_14 = arith.constant 0 : index
    %c0_15 = arith.constant 0 : index
    %c0_16 = arith.constant 0 : index
    %20 = vector.load %arg4[%c0_14, %c0_15, %c0_16] : memref<1x16x1xf32, #tpu.memory_space<vmem>>, vector<1x16x1xf32>
    %21 = vector.shape_cast %20 : vector<1x16x1xf32> to vector<16x1xf32>
    %22 = vector.shape_cast %19 : vector<16x1xf32> to vector<1x16x1xf32>
    tpu.vector_store %arg4[%c0_14, %c0_15, %c0_16], %22 {strides = array<i32>} : memref<1x16x1xf32, #tpu.memory_space<vmem>>, vector<1x16x1xf32>,
    return
  }
  func.func @transform_0(%arg0: i32, %arg1: i32) -> (i32, i32, i32) {
    %c0_i32 = arith.constant 0 : i32
    %c0_i32_0 = arith.constant 0 : i32
    return %arg0, %c0_i32, %arg1 : i32, i32, i32
  }
  func.func @transform_1(%arg0: i32, %arg1: i32) -> (i32, i32, i32) {
    %c0_i32 = arith.constant 0 : i32
    %c0_i32_0 = arith.constant 0 : i32
    %c0_i32_1 = arith.constant 0 : i32
    return %arg0, %c0_i32, %c0_i32_0 : i32, i32, i32
  }
  func.func @transform_2(%arg0: i32, %arg1: i32) -> (i32, i32, i32) {
    %c0_i32 = arith.constant 0 : i32
    %c0_i32_0 = arith.constant 0 : i32
    %c0_i32_1 = arith.constant 0 : i32
    return %arg0, %c0_i32, %c0_i32_0 : i32, i32, i32
  }
}

</mosaic_0001>

<llo_original>
// kernel: tpu_custom_call.1
$region0: #{tpu_custom_call.1}
  #allocation0 [shape = 'u32[]', space=smem, size = 0x4, offset = 0x4, fixed_abs, tag = 'smem constant byte address 0x4 - core index']
  #allocation1 [shape = 'u32[72,128]{1,0:T(1,128)}', space=vmem, size = 0x9000, scoped, tag = 'internal scratch']
  %s0 = inlined_call_operand.hbm [shape: f32[2,16,256], index: 0, kind: input, shape index: {}]
  %s1 = inlined_call_operand.hbm [shape: f32[2,16,16], index: 1, kind: output, shape index: {0}]
  %s2 = inlined_call_operand.vmem [shape: f32[2,16,1], index: 2, kind: output, shape index: {1}]
  %3 = xla_tuple %s1, %s2
  %s4 = sld [smem:[#allocation0]]
  $region53: #{tpu_custom_call.1} parent=0
    _
  %s6 = ssub.s32 1, %s4
  %s7 = scalar_select 0, %s6, %s4
  $region1: #{tpu_custom_call.1} parent=0
    #allocation2 [shape = 'u8[32768]{0}', space=vmem, size = 0x8000, scoped, tag = 'input window, operand 0']
    #allocation3 [shape = 's32[2]{0}', space=sflag, size = 0x8, scoped, tag = 'scoped memory for tpu_custom_call.1']
    #allocation4 [shape = 's32[2]{0}', space=sflag, size = 0x8, scoped, tag = 'scoped memory for tpu_custom_call.1']
    #allocation5 [shape = 'u8[16384]{0}', space=vmem, size = 0x4000, scoped, tag = 'output window, operand 0']
    %8 = vsyncpa [#allocation3], 0
    %s9 = scalar_lea.sflag [#allocation3], 1
    %10 = vsyncpa %s9, 0
    %11 = vsyncpa [#allocation4], 0
    %s12 = scalar_lea.sflag [#allocation4], 1
    %13 = vsyncpa %s12, 0
    loop: start=0, step=1, limit=4
    $region2: #{tpu_custom_call.1} parent=1 // loop_pre_header
      _
    $region3: #{tpu_custom_call.1} parent=1 // loop_header
      %s15 = sphi 0, %s19
      %p16 = scmp.ge.s32.totalorder %s15, 4
      %s22 = sphi 0, %s34
      %s23 = sphi 0, %s30
      %s24 = sphi 0, %s22
      %s25 = sphi 0, %s23
      %s26 = sphi 0, %s24
      %s27 = sphi 0, %s25
      %s39 = sphi 0, %s41
      %s42 = sphi 0, %s39
      %s43 = sphi 0, %s42
      %s59 = sphi 0, %s43
      %s65 = sphi 0, %s67
      %s68 = sphi 0, %s65
      %s69 = sphi 0, %s68
      %s85 = sphi 0, %s69
      %s91 = sphi 0, %s93
      %s94 = sphi 0, %s91
      %s95 = sphi 0, %s94
      %s111 = sphi 0, %s95
    $region4: #{tpu_custom_call.1} parent=1 // loop_header_branch
      %18 = sbr.rel (%p16) target = $region8
    $region5: #{tpu_custom_call.1} parent=1 // loop_body
      %s20 = ssub.s32 %s15, 1
      %s21 = ssub.s32 %s15, 2
      %s28 = sadd.s32 1, %s23
      %p29 = scmp.ge.s32.totalorder %s28, 1
      %s30 = scalar_select %p29, 0, %s28
      %s31 = sadd.s32 1, %s22
      %s32 = scalar_select %p29, %s31, %s22
      %p33 = scmp.ge.s32.totalorder %s32, 2
      %s34 = scalar_select %p33, 0, %s32
      %s35 = ssub.s32 %s22, %s34
      %s36 = ssub.s32 %s23, %s30
      %s37 = sor.u32 %s35, %s36
      %p38 = scmp.eq.s32.totalorder %s37, 0
      %s40 = sadd.s32 %s39, 1
      %s41 = scalar_select %p38, %s39, %s40
      %p44 = pneg %p38
      %p45 = scmp.eq.s32.totalorder %s15, 1
      %p46 = por %p44, %p45
      %p47 = scmp.ne.s32.totalorder %s39, %s42
      %p48 = scmp.eq.s32.totalorder %s15, 0
      %p49 = por %p47, %p48
      %p50 = scmp.ne.s32.totalorder %s39, %s42
      %p51 = scmp.eq.s32.totalorder %s20, 1
      %p52 = por %p50, %p51
      %p53 = scmp.ne.s32.totalorder %s42, %s43
      %p54 = scmp.eq.s32.totalorder %s20, 0
      %p55 = por %p53, %p54
      %p56 = scmp.ne.s32.totalorder %s42, %s43
      %p57 = scmp.eq.s32.totalorder %s21, 1
      %p58 = por %p56, %p57
      %p60 = scmp.ne.s32.totalorder %s43, %s59
      %p61 = scmp.eq.s32.totalorder %s21, 0
      %p62 = por %p60, %p61
      %s63 = ssub.s32 %s22, %s34
      %p64 = scmp.eq.s32.totalorder %s63, 0
      %s66 = sadd.s32 %s65, 1
      %s67 = scalar_select %p64, %s65, %s66
      %p70 = pneg %p64
      %p71 = scmp.eq.s32.totalorder %s15, 1
      %p72 = por %p70, %p71
      %p73 = scmp.ne.s32.totalorder %s65, %s68
      %p74 = scmp.eq.s32.totalorder %s15, 0
      %p75 = por %p73, %p74
      %p76 = scmp.ne.s32.totalorder %s65, %s68
      %p77 = scmp.eq.s32.totalorder %s20, 1
      %p78 = por %p76, %p77
      %p79 = scmp.ne.s32.totalorder %s68, %s69
      %p80 = scmp.eq.s32.totalorder %s20, 0
      %p81 = por %p79, %p80
      %p82 = scmp.ne.s32.totalorder %s68, %s69
      %p83 = scmp.eq.s32.totalorder %s21, 1
      %p84 = por %p82, %p83
      %p86 = scmp.ne.s32.totalorder %s69, %s85
      %p87 = scmp.eq.s32.totalorder %s21, 0
      %p88 = por %p86, %p87
      %s89 = ssub.s32 %s22, %s34
      %p90 = scmp.eq.s32.totalorder %s89, 0
      %s92 = sadd.s32 %s91, 1
      %s93 = scalar_select %p90, %s91, %s92
      %p96 = pneg %p90
      %p97 = scmp.eq.s32.totalorder %s15, 1
      %p98 = por %p96, %p97
      %p99 = scmp.ne.s32.totalorder %s91, %s94
      %p100 = scmp.eq.s32.totalorder %s15, 0
      %p101 = por %p99, %p100
      %p102 = scmp.ne.s32.totalorder %s91, %s94
      %p103 = scmp.eq.s32.totalorder %s20, 1
      %p104 = por %p102, %p103
      %p105 = scmp.ne.s32.totalorder %s94, %s95
      %p106 = scmp.eq.s32.totalorder %s20, 0
      %p107 = por %p105, %p106
      %p108 = scmp.ne.s32.totalorder %s94, %s95
      %p109 = scmp.eq.s32.totalorder %s21, 1
      %p110 = por %p108, %p109
      %p112 = scmp.ne.s32.totalorder %s95, %s111
      %p113 = scmp.eq.s32.totalorder %s21, 0
      %p114 = por %p112, %p113
      %p115 = scmp.le.s32.totalorder 1, %s15
      %p116 = scmp.lt.s32.totalorder %s15, 3
      %p117 = pnand %p115, %p116
      %p118 = pneg %p117
      // Predicated region
      $region9: #{tpu_custom_call.1} parent=5 // pred_check
        _
      $region10: #{tpu_custom_call.1} parent=5 // pred_check_branch
        %120 = sbr.rel (%p117) target = $region12
      $region11: #{tpu_custom_call.1} parent=5 // pred_region
        %s121 = ssub.s32 %s15, 1
      $region12: #{tpu_custom_call.1} parent=5 // pred_fallthru
        _
      %p122 = scmp.lt.s32.totalorder %s15, 2
      // Predicated region
      $region13: #{tpu_custom_call.1} parent=5 // pred_check
        %p123 = pneg %p122
      $region14: #{tpu_custom_call.1} parent=5 // pred_check_branch
        %125 = sbr.rel (%p123) target = $region16
      $region15: #{tpu_custom_call.1} parent=5 // pred_region
        // Predicated region
        $region17: #{tpu_custom_call.1} parent=15 // pred_check
          %p126 = pneg %p49
        $region18: #{tpu_custom_call.1} parent=15 // pred_check_branch
          %128 = sbr.rel (%p126) target = $region20
        $region19: #{tpu_custom_call.1} parent=15 // pred_region
          %s129 = sand.u32 %s39, 1
          %s130 = scalar_lea.sflag [#allocation3], %s129
          %s131 = sand.u32 %s39, 1
          %s132 = smul.addr %s131, 32
          %s133 = scalar_lea.vmem [#allocation2], %s132
          %s134 = smul.u32 2, %s23
          %136 = vsyncadd %s130, 0
          %s137 = smul.addr %s22, 4
          %s138 = sadd.s32 %s134, %s137
          %s139 = smul.addr %s138, 8
          %s140 = scalar_lea.hbm %s0, %s139
          %s141 = sshll.u32 %s140, 4
          %s142 = int_to_ptr.hbm [resolvable:$true] %s141
          %s143 = sshll.u32 %s133, 4
          %s144 = int_to_ptr.vmem [resolvable:$true] %s143
          %149 = dma.hbm_to_vmem [thread:$0]  %s142, 512, %s144, %s130, 256, 256, 16
        $region20: #{tpu_custom_call.1} parent=15 // pred_fallthru
          _
      $region16: #{tpu_custom_call.1} parent=5 // pred_fallthru
        _
      %p150 = scmp.le.s32.totalorder 1, %s15
      %p151 = scmp.lt.s32.totalorder %s15, 3
      %p152 = pnand %p150, %p151
      %p153 = pneg %p152
      // Predicated region
      $region21: #{tpu_custom_call.1} parent=5 // pred_check
        _
      $region22: #{tpu_custom_call.1} parent=5 // pred_check_branch
        %155 = sbr.rel (%p152) target = $region24
      $region23: #{tpu_custom_call.1} parent=5 // pred_region
        %s156 = ssub.s32 %s15, 1
        %s157 = sand.u32 %s42, 1
        %s158 = scalar_lea.sflag [#allocation3], %s157
        %s159 = sand.u32 %s42, 1
        %s160 = smul.addr %s159, 32
        %s161 = scalar_lea.vmem [#allocation2], %s160
        // Predicated region
        $region25: #{tpu_custom_call.1} parent=23 // pred_check
          %p162 = pneg %p55
        $region26: #{tpu_custom_call.1} parent=23 // pred_check_branch
          %164 = sbr.rel (%p162) target = $region28
        $region27: #{tpu_custom_call.1} parent=23 // pred_region
          %166 = dma.done %s158, 512
        $region28: #{tpu_custom_call.1} parent=23 // pred_fallthru
          _
        %s167 = sand.u32 %s42, 1
        %s168 = scalar_lea.sflag [#allocation3], %s167
        %s169 = sand.u32 %s42, 1
        %s170 = smul.addr %s169, 32
        %s171 = scalar_lea.vmem [#allocation2], %s170
        %p172 = pneg %p55
        %p173 = pneg %p52
        %p174 = pneg %p81
        %p175 = pneg %p78
        %s176 = sand.u32 %s68, 1
        %s177 = scalar_lea.sflag [#allocation4], %s176
        %s178 = sand.u32 %s68, 1
        %s179 = smul.addr %s178, 16
        %s180 = scalar_lea.vmem [#allocation5], %s179
        %p181 = pneg %p107
        %p182 = pneg %p104
        %p183 = scmp.lt.s32.totalorder %s24, 1
        %s184 = scalar_select %p183, %s24, 1
        %s185 = smul.addr %s184, 2
        %s186 = smul.addr %s185, 8
        %s187 = scalar_lea.vmem %s2, %s186
        %s188 = smul.u32 2, %s25
        %p189 = scmp.lt.s32.totalorder %s24, 1
        %s190 = scalar_select %p189, %s24, 1
        %s191 = smul.addr %s190, 2
        %s192 = smul.addr %s191, 8
        %s193 = scalar_lea.vmem %s2, %s192
        %p195 = scmp.eq.s32.totalorder %s25, 0
        // Predicated region
        $region29: #{tpu_custom_call.1} parent=23 // pred_check
          %p196 = pneg %p195
        $region30: #{tpu_custom_call.1} parent=23 // pred_check_branch
          %198 = sbr.rel (%p196) target = $region32
        $region31: #{tpu_custom_call.1} parent=23 // pred_region
          %vm199 = vcmask 130048
          %200 = vst.msk [vmem:[%s180] sm:$0xff] %vm199, 0.0
          %201 = vst.msk [vmem:[%s180 + $0x8] sm:$0xff] %vm199, 0.0
          %vm202 = vcmask 7168
          %203 = vst.msk [vmem:[%s193] sm:$0xff] %vm202, 0.0
          %204 = vst.msk [vmem:[%s193 + $0x8] sm:$0xff] %vm202, 0.0
        $region32: #{tpu_custom_call.1} parent=23 // pred_fallthru
          _
        %v205 = vld [vmem:[%s161] sm:$0xff]
        %v206 = vld [vmem:[%s161 + $0x8] sm:$0xff]
        %v207 = vld [vmem:[%s161 + $0x10] sm:$0xff]
        %v208 = vld [vmem:[%s161 + $0x18] sm:$0xff]
        %v209 = vmax.f32 %v205, 0.0
        %v210 = vmax.f32 %v206, 0.0
        %v211 = vmax.f32 %v207, 0.0
        %v212 = vmax.f32 %v208, 0.0
        %v213 = vpack.c.bf16 %v211, %v209
        %v214 = vpack.c.bf16 %v212, %v210
        %v215 = vld [vmem:[%s180] sm:$0xff]
        %v216 = vld [vmem:[%s180 + $0x8] sm:$0xff]
        %217 = vmatpush.bf16.xpose.msra.mxu0 0
        %218 = vmatpush.bf16.xpose.msra.mxu0 0
        %219 = vmatpush.bf16.xpose.msra.mxu0 0
        %220 = vmatpush.bf16.xpose.msra.mxu0 0
        %221 = vmatpush.bf16.xpose.msra.mxu0 0
        %222 = vmatpush.bf16.xpose.msra.mxu0 0
        %223 = vmatpush.bf16.xpose.msra.mxu0 0
        %224 = vmatpush.bf16.xpose.msra.mxu0 %v213
        %225 = vmatmul.bf16.gmra.mxu0 %v213
        %v226 = vpop.f32.mrf.mxu0
        %v227 = vadd.f32 0.0, %v226
        %v228 = vpop.f32.mrf.mxu0
        %v229 = vadd.f32 0.0, %v228
        %230 = vdwg.mxu0
        %231 = vmatpush.bf16.xpose.msra.mxu0 0
        %232 = vmatpush.bf16.xpose.msra.mxu0 0
        %233 = vmatpush.bf16.xpose.msra.mxu0 0
        %234 = vmatpush.bf16.xpose.msra.mxu0 0
        %235 = vmatpush.bf16.xpose.msra.mxu0 0
        %236 = vmatpush.bf16.xpose.msra.mxu0 0
        %237 = vmatpush.bf16.xpose.msra.mxu0 0
        %238 = vmatpush.bf16.xpose.msra.mxu0 %v214
        %239 = vmatmul.bf16.gmra.mxu0 %v214
        %v240 = vpop.f32.mrf.mxu0
        %v241 = vadd.f32 %v227, %v240
        %v242 = vpop.f32.mrf.mxu0
        %v243 = vadd.f32 %v229, %v242
        %244 = vdwg.mxu0
        %v245 = vadd.f32 %v215, %v241
        %v246 = vadd.f32 %v216, %v243
        %vm247 = vcmask 130048
        %248 = vst.msk [vmem:[%s180] sm:$0xff] %vm247, %v245
        %249 = vst.msk [vmem:[%s180 + $0x8] sm:$0xff] %vm247, %v246
        %v250 = vld [vmem:[%s193] sm:$0xff]
        %v251 = vld [vmem:[%s193 + $0x8] sm:$0xff]
        %v252 = vadd.f32 %v209, %v210
        %253 = vadd.xlane.f32.xlu0 %v252
        %v254 = vpop.xlane.xlu0 %253
        %v255 = vadd.f32 %v211, %v212
        %256 = vadd.xlane.f32.xlu0 %v255
        %v257 = vpop.xlane.xlu0 %256
        %v258 = vadd.f32 %v250, %v254
        %v259 = vadd.f32 %v251, %v257
        %vm260 = vcmask 7168
        %261 = vst.msk [vmem:[%s193] sm:$0xff] %vm260, %v258
        %262 = vst.msk [vmem:[%s193 + $0x8] sm:$0xff] %vm260, %v259
        %s263 = sand.u32 %s68, 1
        %s264 = scalar_lea.sflag [#allocation4], %s263
        %s265 = sand.u32 %s68, 1
        %s266 = smul.addr %s265, 16
        %s267 = scalar_lea.vmem [#allocation5], %s266
        %p268 = scmp.lt.s32.totalorder %s24, 1
        %s269 = scalar_select %p268, %s24, 1
        %s270 = smul.addr %s269, 2
        %s271 = smul.addr %s270, 8
        %s272 = scalar_lea.vmem %s2, %s271
        // Predicated region
        $region33: #{tpu_custom_call.1} parent=23 // pred_check
          %p273 = pneg %p78
        $region34: #{tpu_custom_call.1} parent=23 // pred_check_branch
          %275 = sbr.rel (%p273) target = $region36
        $region35: #{tpu_custom_call.1} parent=23 // pred_region
          %277 = vsyncadd %s264, 0
          %s278 = smul.addr %s24, 2
          %s279 = smul.addr %s278, 8
          %s280 = scalar_lea.hbm %s1, %s279
          %s281 = sshll.u32 %s267, 4
          %s282 = int_to_ptr.vmem [resolvable:$true] %s281
          %s283 = sshll.u32 %s280, 4
          %s284 = int_to_ptr.hbm [resolvable:$true] %s283
          %289 = dma.vmem_to_hbm [thread:$0]  %s282, 256, %s284, %s264, 128, 128, 8
        $region36: #{tpu_custom_call.1} parent=23 // pred_fallthru
          _
        // Predicated region
        $region37: #{tpu_custom_call.1} parent=23 // pred_check
          %p290 = pneg %p104
        $region38: #{tpu_custom_call.1} parent=23 // pred_check_branch
          %292 = sbr.rel (%p290) target = $region40
        $region39: #{tpu_custom_call.1} parent=23 // pred_region
          _
        $region40: #{tpu_custom_call.1} parent=23 // pred_fallthru
          _
      $region24: #{tpu_custom_call.1} parent=5 // pred_fallthru
        _
      %p293 = scmp.le.s32.totalorder 2, %s15
      // Predicated region
      $region41: #{tpu_custom_call.1} parent=5 // pred_check
        %p294 = pneg %p293
      $region42: #{tpu_custom_call.1} parent=5 // pred_check_branch
        %296 = sbr.rel (%p294) target = $region44
      $region43: #{tpu_custom_call.1} parent=5 // pred_region
        %s297 = ssub.s32 %s15, 2
        // Predicated region
        $region45: #{tpu_custom_call.1} parent=43 // pred_check
          %p298 = pneg %p84
        $region46: #{tpu_custom_call.1} parent=43 // pred_check_branch
          %300 = sbr.rel (%p298) target = $region48
        $region47: #{tpu_custom_call.1} parent=43 // pred_region
          %s301 = sand.u32 %s69, 1
          %s302 = scalar_lea.sflag [#allocation4], %s301
          %s303 = sand.u32 %s69, 1
          %s304 = smul.addr %s303, 16
          %s305 = scalar_lea.vmem [#allocation5], %s304
          %307 = dma.done %s302, 256
        $region48: #{tpu_custom_call.1} parent=43 // pred_fallthru
          _
        // Predicated region
        $region49: #{tpu_custom_call.1} parent=43 // pred_check
          %p308 = pneg %p110
        $region50: #{tpu_custom_call.1} parent=43 // pred_check_branch
          %310 = sbr.rel (%p308) target = $region52
        $region51: #{tpu_custom_call.1} parent=43 // pred_region
          %p311 = scmp.lt.s32.totalorder %s26, 1
          %s312 = scalar_select %p311, %s26, 1
          %s313 = smul.addr %s312, 2
          %s314 = smul.addr %s313, 8
          %s315 = scalar_lea.vmem %s2, %s314
        $region52: #{tpu_custom_call.1} parent=43 // pred_fallthru
          _
      $region44: #{tpu_custom_call.1} parent=5 // pred_fallthru
        _
    $region6: #{tpu_custom_call.1} parent=1 // loop_footer
      %s19 = sadd.s32 1, %s15
    $region7: #{tpu_custom_call.1} parent=1 // loop_footer_branch
      %14 = sbr.rel target = $region3
    $region8: #{tpu_custom_call.1} parent=1 // loop_exit
      _
    %316 = vsyncpa [#allocation3], 1
    %s317 = scalar_lea.sflag [#allocation3], 1
    %318 = vsyncpa %s317, 1
    %319 = vsyncpa [#allocation4], 1
    %s320 = scalar_lea.sflag [#allocation4], 1
    %321 = vsyncpa %s320, 1

</llo_original>
